<compile_context>
chip_gen: v7x
topology: tpu7x:2x2x1
jax: 0.10.0
libtpu: 0.0.40
codegen_flags: <defaults>
</compile_context>

<pallas_src>
import functools
import math

import jax
import jax.numpy as jnp
from jax import lax
from jax.experimental import pallas as pl
from jax.experimental.pallas import tpu as pltpu


# ---------------------------------------------------------------------------
# helpers
# ---------------------------------------------------------------------------
def _tile_lanes(block, reps):
    """`reps` lane-wise copies of `block`, built with O(log reps) concatenates
    (avoids a reps-operand concatenate and Mosaic-unfriendly reshapes)."""
    out = None
    piece = block
    r = int(reps)
    while True:
        if r & 1:
            out = piece if out is None else jnp.concatenate([out, piece], axis=1)
        r >>= 1
        if not r:
            break
        piece = jnp.concatenate([piece, piece], axis=1)
    return out


@functools.lru_cache(maxsize=None)
def _roll_convention():
    """Detect pltpu.roll's lane-rotate convention with a tiny probe kernel.

    Returns True if a positive shift moves data toward higher lane indices
    (jnp.roll convention), False if it is the opposite rotation, and None if
    the probe fails to lower (kernels then use concat-based shifts)."""
    try:
        def probe(x_ref, o_ref):
            o_ref[...] = pltpu.roll(x_ref[...], 8, axis=1)

        x = jnp.broadcast_to(jnp.arange(256, dtype=jnp.int32)[None, :], (8, 256))
        y = pl.pallas_call(
            probe, out_shape=jax.ShapeDtypeStruct((8, 256), jnp.int32))(x)
        return bool(int(y[0, 8]) == 0)
    except Exception:
        return None


def _vmem_budget_and_limit():
    """(working budget, vmem_limit_bytes) derived from the chip generation."""
    cap = 128 * 1024 * 1024
    try:
        info = pltpu.get_tpu_info()
        cap = int(getattr(info, "vmem_capacity_bytes", cap) or cap)
    except Exception:
        pass
    if cap >= 100 * 1024 * 1024:                 # v5e / v6e: 128 MiB physical
        return 28 * 1024 * 1024, 64 * 1024 * 1024
    return 14 * 1024 * 1024, 44 * 1024 * 1024    # v7x: 64 MiB physical per TC


def _pick_row_tile(nrows, per_row_bytes, budget_bytes, fixed_bytes=0):
    """Rows per grid step: big enough to amortize the ~0.35us/step overhead,
    small enough for VMEM, and capped so the grid has >=4 steps when `nrows`
    allows (2 TCs on v7x + DMA/compute overlap on every generation)."""
    avail = max(budget_bytes - fixed_bytes, per_row_bytes)
    rt = max(1, min(nrows, avail // max(per_row_bytes, 1)))
    if nrows > 8:
        cap = max(8, (pl.cdiv(nrows, 4) // 8) * 8)
        rt = min(rt, cap)
        rt = max(8, (rt // 8) * 8)               # 8-aligned sublane blocks
        if rt >= nrows:
            rt = nrows
    else:
        # TODO(synk): for tiny batches a second (time-chunk) grid axis would be
        # needed to give v7x's second TensorCore work; single step for now.
        rt = nrows
    return int(rt)


# ---------------------------------------------------------------------------
# kernels
# ---------------------------------------------------------------------------
def _moving_avg_flat_kernel(x_ref, o_ref, *, kernel_size, pad, L, C, out_len,
                            use_cumsum, roll_mode):
    """Stride-1 moving average over a (bt, L*C) lane-flattened block.

    Lane index l = t*C + c (time-major), so a shift by j time steps is a lane
    shift by j*C while loads/stores stay dense even for tiny C."""
    k = kernel_size
    x = x_ref[...].astype(jnp.float32)            # (bt, L*C)
    bt = x.shape[0]
    L_pad = L + 2 * pad
    W = L_pad * C

    # Replicate padding along time, built with O(log pad) lane concatenates.
    parts = []
    if pad > 0:
        parts.append(_tile_lanes(x[:, :C], pad))
    parts.append(x)
    if pad > 0:
        parts.append(_tile_lanes(x[:, (L - 1) * C:], pad))

    if not use_cumsum:
        xp = parts[0] if len(parts) == 1 else jnp.concatenate(parts, axis=1)
        # Direct k-term sliding sum: cheapest for small k.
        win = xp[:, :out_len * C]
        for j in range(1, k):
            win = win + xp[:, j * C:(j + out_len) * C]
        o_ref[...] = (win * (1.0 / k)).astype(o_ref.dtype)
        return

    # Large-k path: inclusive prefix sum over time (Hillis-Steele), then one
    # dense difference.  Lane width is zero-padded to a multiple of 128 so all
    # rotates are vreg-aligned; tail zeros never feed lanes < W (shifts only
    # move data toward higher lane indices).
    Wp = ((W + 127) // 128) * 128
    if Wp > W:
        parts.append(jnp.zeros((bt, Wp - W), jnp.float32))
    xp = parts[0] if len(parts) == 1 else jnp.concatenate(parts, axis=1)

    lane = lax.broadcasted_iota(jnp.int32, (bt, Wp), 1)   # hoisted out of scan

    def shift_right_zero(v, m):
        # v shifted toward higher lane indices by m lanes, zero fill in front.
        if m <= 0:
            return v
        if m >= Wp:
            return jnp.zeros_like(v)
        if roll_mode is None:          # roll probe failed: concat fallback
            return jnp.concatenate(
                [jnp.zeros((bt, m), jnp.float32), v[:, :Wp - m]], axis=1)
        amt = m if roll_mode else Wp - m
        return jnp.where(lane >= m, pltpu.roll(v, amt, axis=1), 0.0)

    cs = xp
    s = 1
    while s < L_pad:                   # log2(L_pad) rotate+add steps
        cs = cs + shift_right_zero(cs, s * C)
        s *= 2
    # Window sum ending at time i is cs[i] - cs[i-k].
    diff = cs - shift_right_zero(cs, k * C)
    win = diff[:, (k - 1) * C:(k - 1 + out_len) * C]
    o_ref[...] = (win * (1.0 / k)).astype(o_ref.dtype)


def _moving_avg_mxu_kernel(x_ref, o_ref, *, kernel_size, stride, pad, L, out_len):
    """Moving average as a banded matmul.  One (batch, channel) series per
    row; the band's first/last rows carry the replicate-pad edge weights, so
    no padded copy of x is ever materialized."""
    k = kernel_size
    x = x_ref[...].astype(jnp.float32)            # (rt, L), time in lanes
    li = lax.broadcasted_iota(jnp.int32, (L, out_len), 0)     # source index l
    ti = lax.broadcasted_iota(jnp.int32, (L, out_len), 1)     # output index t
    lo = ti * stride - pad                         # window start (unclipped)
    hi = lo + (k - 1)                              # window end   (unclipped)
    w = jnp.where((li >= lo) & (li <= hi), 1.0, 0.0)
    cnt0 = jnp.clip(1 - lo, 0, k).astype(jnp.float32)        # weight on x[0]
    cntL = jnp.clip(hi - (L - 2), 0, k).astype(jnp.float32)  # weight on x[L-1]
    w = jnp.where(li == 0, cnt0, w)
    w = jnp.where(li == L - 1, cntL, w)
    band = w * (1.0 / k)                           # (L, out_len)
    # TODO(synk): pass precision=HIGHEST once exact-f32 MXU parity is required.
    o = jnp.dot(x, band, preferred_element_type=jnp.float32)
    o_ref[...] = o.astype(o_ref.dtype)


# ---------------------------------------------------------------------------
# wrapper
# ---------------------------------------------------------------------------
def moving_avg(x, kernel_size, stride):
    """Equivalent of moving_avg.forward for x of shape (B, L, C)."""
    B, L, C = x.shape
    k = int(kernel_size)
    s = int(stride)
    pad = (k - 1) // 2
    L_pad = L + 2 * pad
    out_len = (L_pad - k) // s + 1          # final output length (AvgPool1d)
    out_len1 = L_pad - k + 1                # stride-1 output length
    itemsize = jnp.dtype(x.dtype).itemsize

    vmem_budget, vmem_limit = _vmem_budget_and_limit()
    cparams = pltpu.CompilerParams(
        dimension_semantics=("parallel",),
        vmem_limit_bytes=vmem_limit,
    )

    log2_lpad = max(1, math.ceil(math.log2(max(L_pad, 2))))
    large_k = k > 2 * log2_lpad + 4         # crossover for the prefix-sum path
    use_mxu = large_k and out_len >= 128 and L >= 2

    if use_mxu:
        rows = B * C
        fixed = 6 * L * out_len * 4                           # band + iotas
        per_row = 2 * (L + out_len) * itemsize + (L + out_len + 8) * 4
        rt = _pick_row_tile(rows, per_row, vmem_budget, fixed)
        cost = pl.CostEstimate(
            flops=2 * rows * L * out_len, transcendentals=0,
            bytes_accessed=rows * (L + out_len) * itemsize)
        # Layout plumbing (XLA): one series per row, time lane-dense.
        xm = jnp.transpose(x, (0, 2, 1)).reshape(rows, L)
        kern = functools.partial(
            _moving_avg_mxu_kernel, kernel_size=k, stride=s, pad=pad, L=L,
            out_len=out_len)
        out2 = pl.pallas_call(
            kern,
            out_shape=jax.ShapeDtypeStruct((rows, out_len), x.dtype),
            grid=(pl.cdiv(rows, rt),),
            in_specs=[pl.BlockSpec((rt, L), lambda r: (r, 0))],
            out_specs=pl.BlockSpec((rt, out_len), lambda r: (r, 0)),
            compiler_params=cparams,
            cost_estimate=cost,
        )(xm)
        return jnp.transpose(out2.reshape(B, C, out_len), (0, 2, 1))

    # Flat lane-dense path (stride handled by downsampling the stride-1 result).
    use_cumsum = large_k and L_pad <= 4096   # bound prefix-sum cancellation
    roll_mode = _roll_convention() if use_cumsum else True
    n_tmp = 10 if use_cumsum else 7
    per_row = C * (2 * (L + out_len1) * itemsize + n_tmp * (L_pad + 8) * 4)
    bt = _pick_row_tile(B, per_row, vmem_budget)
    flops = (3 * B * L_pad * C * (log2_lpad + 1)) if use_cumsum \
        else (2 * B * out_len1 * C * k)
    cost = pl.CostEstimate(
        flops=flops, transcendentals=0,
        bytes_accessed=B * (L + out_len1) * C * itemsize)
    kern = functools.partial(
        _moving_avg_flat_kernel, kernel_size=k, pad=pad, L=L, C=C,
        out_len=out_len1, use_cumsum=use_cumsum, roll_mode=roll_mode)
    out_flat = pl.pallas_call(
        kern,
        out_shape=jax.ShapeDtypeStruct((B, out_len1 * C), x.dtype),
        grid=(pl.cdiv(B, bt),),
        in_specs=[pl.BlockSpec((bt, L * C), lambda b: (b, 0))],
        out_specs=pl.BlockSpec((bt, out_len1 * C), lambda b: (b, 0)),
        compiler_params=cparams,
        cost_estimate=cost,
    )(x.reshape(B, L * C))
    out = out_flat.reshape(B, out_len1, C)
    if s > 1:
        # TODO(synk): dedicated strided kernel if stride > 1 ever matters.
        out = out[:, ::s, :]
    return out


def _moving_avg_ref(x, kernel_size, stride):
    """Pure-JAX reference mirroring the PyTorch semantics."""
    pad = (kernel_size - 1) // 2
    front = jnp.repeat(x[:, 0:1, :], pad, axis=1)
    end = jnp.repeat(x[:, -1:, :], pad, axis=1)
    xp = jnp.concatenate([front, x, end], axis=1)
    L_pad = xp.shape[1]
    out_len = (L_pad - kernel_size) // stride + 1
    windows = jnp.stack(
        [xp[:, t * stride:t * stride + kernel_size, :] for t in range(out_len)],
        axis=1)                                   # (B, out_len, k, C)
    return windows.mean(axis=2).astype(x.dtype)


if __name__ == "__main__":
    key = jax.random.PRNGKey(0)
    x_small = jax.random.normal(key, (2, 16, 8), dtype=jnp.float32)
    # Larger series so out_len >= 128 exercises the banded-matmul (MXU) path.
    x_large = jax.random.normal(key, (4, 256, 6), dtype=jnp.float32)

    cases = [
        (x_small, 5, 1, 1e-5),    # small k     -> direct sliding-sum path
        (x_small, 4, 1, 1e-5),    # even k      -> asymmetric replicate pad
        (x_small, 25, 1, 1e-5),   # large k     -> roll-based prefix-sum path
        (x_small, 5, 2, 1e-5),    # stride > 1  -> stride-1 result, downsampled
        (x_large, 25, 1, 5e-3),   # large k, out_len >= 128 -> MXU banded matmul
        # (looser tol: the f32 matmul may run in reduced-precision MXU passes)
    ]
    for xi, ks, st, tol in cases:
        out = jax.block_until_ready(moving_avg(xi, ks, st))
        ref = _moving_avg_ref(xi, ks, st)
        assert out.shape == ref.shape, (ks, st, out.shape, ref.shape)
        assert jnp.allclose(out, ref, atol=tol, rtol=tol), (
            f"mismatch vs reference for kernel_size={ks} stride={st}")
    print("KERNEL_OK")
</pallas_src>

<mosaic_0001>
module attributes {stable_mosaic.version = 11 : i64} {
  func.func @_moving_avg_flat_kernel(%arg0: i32, %arg1: memref<2x128xf32, #tpu.memory_space<vmem>>, %arg2: memref<2x128xf32, #tpu.memory_space<vmem>>) attributes {dimension_semantics = [#tpu.dimension_semantics<parallel>], iteration_bounds = array<i64: 1>, scalar_prefetch = 0 : i64, scratch_operands = 0 : i64, tpu.core_type = #tpu.core_type<tc>, window_params = [{transform_indices = @transform_0, window_bounds = array<i64: 2, 128>}, {transform_indices = @transform_1, window_bounds = array<i64: 2, 128>}]} {
    %c0 = arith.constant 0 : index
    %c0_0 = arith.constant 0 : index
    %0 = vector.load %arg1[%c0, %c0_0] : memref<2x128xf32, #tpu.memory_space<vmem>>, vector<2x128xf32>
    %1 = vector.extract_strided_slice %0 {offsets = [0, 0], sizes = [2, 8], strides = [1, 1]} : vector<2x128xf32> to vector<2x8xf32>
    %2 = tpu.concatenate %1, %1 in 1 : vector<2x8xf32>, vector<2x8xf32> -> vector<2x16xf32>
    %3 = vector.extract_strided_slice %0 {offsets = [0, 120], sizes = [2, 8], strides = [1, 1]} : vector<2x128xf32> to vector<2x8xf32>
    %4 = tpu.concatenate %3, %3 in 1 : vector<2x8xf32>, vector<2x8xf32> -> vector<2x16xf32>
    %5 = tpu.concatenate %2, %0, %4 in 1 : vector<2x16xf32>, vector<2x128xf32>, vector<2x16xf32> -> vector<2x160xf32>
    %6 = vector.extract_strided_slice %5 {offsets = [0, 0], sizes = [2, 128], strides = [1, 1]} : vector<2x160xf32> to vector<2x128xf32>
    %7 = vector.extract_strided_slice %5 {offsets = [0, 8], sizes = [2, 128], strides = [1, 1]} : vector<2x160xf32> to vector<2x128xf32>
    %8 = arith.addf %6, %7 : vector<2x128xf32>
    %9 = vector.extract_strided_slice %5 {offsets = [0, 16], sizes = [2, 128], strides = [1, 1]} : vector<2x160xf32> to vector<2x128xf32>
    %10 = arith.addf %8, %9 : vector<2x128xf32>
    %11 = vector.extract_strided_slice %5 {offsets = [0, 24], sizes = [2, 128], strides = [1, 1]} : vector<2x160xf32> to vector<2x128xf32>
    %12 = arith.addf %10, %11 : vector<2x128xf32>
    %13 = vector.extract_strided_slice %5 {offsets = [0, 32], sizes = [2, 128], strides = [1, 1]} : vector<2x160xf32> to vector<2x128xf32>
    %14 = arith.addf %12, %13 : vector<2x128xf32>
    %cst = arith.constant 2.000000e-01 : f32
    %15 = vector.broadcast %cst : f32 to vector<2x128xf32>
    %16 = arith.mulf %14, %15 : vector<2x128xf32>
    %c0_1 = arith.constant 0 : index
    %c0_2 = arith.constant 0 : index
    %17 = vector.load %arg2[%c0_1, %c0_2] : memref<2x128xf32, #tpu.memory_space<vmem>>, vector<2x128xf32>
    tpu.vector_store %arg2[%c0_1, %c0_2], %16 {strides = array<i32>} : memref<2x128xf32, #tpu.memory_space<vmem>>, vector<2x128xf32>,
    return
  }
  func.func @transform_0(%arg0: i32) -> (i32, i32) {
    %c0_i32 = arith.constant 0 : i32
    %c0_i32_0 = arith.constant 0 : i32
    return %arg0, %c0_i32 : i32, i32
  }
  func.func @transform_1(%arg0: i32) -> (i32, i32) {
    %c0_i32 = arith.constant 0 : i32
    %c0_i32_0 = arith.constant 0 : i32
    return %arg0, %c0_i32 : i32, i32
  }
}

</mosaic_0001>

<llo_original>
// kernel: tpu_custom_call.1
$region0: #{tpu_custom_call.1}
  #allocation0 [shape = 'u32[]', space=smem, size = 0x4, offset = 0x4, fixed_abs, tag = 'smem constant byte address 0x4 - core index']
  #allocation1 [shape = 'u32[144,128]{1,0:T(1,128)}', space=vmem, size = 0x12000, scoped, tag = 'internal scratch']
  %s0 = inlined_call_operand.hbm [shape: f32[2,128], index: 0, kind: input, shape index: {}]
  %s1 = inlined_call_operand.hbm [shape: f32[2,128], index: 1, kind: output, shape index: {}]
  %s2 = sld [smem:[#allocation0]]
  $region18: #{tpu_custom_call.1} parent=0
    _
  %s4 = ssub.s32 1, %s2
  %s5 = scalar_select 0, %s4, %s2
  $region1: #{tpu_custom_call.1} parent=0
    #allocation2 [shape = 'u8[1024]{0}', space=vmem, size = 0x400, scoped, tag = 'input window, operand 0, single buffered']
    #allocation3 [shape = 's32[1]{0}', space=sflag, size = 0x4, scoped, tag = 'scoped memory for tpu_custom_call.1']
    #allocation4 [shape = 's32[1]{0}', space=sflag, size = 0x4, scoped, tag = 'scoped memory for tpu_custom_call.1']
    #allocation5 [shape = 'u8[1024]{0}', space=vmem, size = 0x400, scoped, tag = 'output window, operand 0, single buffered']
    %6 = vsyncpa [#allocation3], 0
    %7 = vsyncpa [#allocation4], 0
    // Predicated region
    $region2: #{tpu_custom_call.1} parent=1 // pred_check
      _
    $region3: #{tpu_custom_call.1} parent=1 // pred_check_branch
      %9 = sbr.rel (0) target = $region5
    $region4: #{tpu_custom_call.1} parent=1 // pred_region
      %s11 = ssub.s32 32, 32
      %12 = vsyncadd [#allocation3], %s11
      %s14 = sshll.u32 [#allocation2], 4
      %s15 = int_to_ptr.vmem [resolvable:$true] %s14
      %17 = dma.hbm_to_vmem [thread:$0]  %s0, 32, %s15, [#allocation3]
    $region5: #{tpu_custom_call.1} parent=1 // pred_fallthru
      _
    // Predicated region
    $region6: #{tpu_custom_call.1} parent=1 // pred_check
      _
    $region7: #{tpu_custom_call.1} parent=1 // pred_check_branch
      %19 = sbr.rel (0) target = $region9
    $region8: #{tpu_custom_call.1} parent=1 // pred_region
      %20 = dma.done [#allocation3], 32
    $region9: #{tpu_custom_call.1} parent=1 // pred_fallthru
      _
    %v21 = vld [vmem:[#allocation2] sm:$0x3]
    %23 = vrot.lane.b32.xlu0 %v21, 8
    %v24 = vpop.permute.xlu0 %23
    %vm26 = vcmask 64512
    %v27 = vsel %vm26, %v21, %v24
    %28 = vrot.lane.b32.xlu0 %v21, 16
    %v29 = vpop.permute.xlu0 %28
    %v31 = vsel %vm26, %v24, %v29
    %33 = vrot.lane.b32.xlu0 %v31, 16
    %v34 = vpop.permute.xlu0 %33
    %vm36 = vcmask 130048
    %v37 = vsel %vm36, %v27, %v29
    %v38 = vsel %vm36, %v29, %v34
    %41 = vrot.lane.b32.xlu0 %v37, 120
    %v42 = vpop.permute.xlu0 %41
    %43 = vrot.lane.b32.xlu0 %v38, 120
    %v44 = vpop.permute.xlu0 %43
    %vm45 = vcmask 982016
    %v46 = vsel %vm45, %v42, %v44
    %v48 = vadd.f32 %v37, %v46
    %49 = vrot.lane.b32.xlu0 %v37, 112
    %v50 = vpop.permute.xlu0 %49
    %51 = vrot.lane.b32.xlu0 %v38, 112
    %v52 = vpop.permute.xlu0 %51
    %vm53 = vcmask 916480
    %v54 = vsel %vm53, %v50, %v52
    %v56 = vadd.f32 %v48, %v54
    %57 = vrot.lane.b32.xlu0 %v37, 104
    %v58 = vpop.permute.xlu0 %57
    %59 = vrot.lane.b32.xlu0 %v38, 104
    %v60 = vpop.permute.xlu0 %59
    %vm61 = vcmask 850944
    %v62 = vsel %vm61, %v58, %v60
    %v64 = vadd.f32 %v56, %v62
    %65 = vrot.lane.b32.xlu0 %v37, 96
    %v66 = vpop.permute.xlu0 %65
    %67 = vrot.lane.b32.xlu0 %v38, 96
    %v68 = vpop.permute.xlu0 %67
    %vm69 = vcmask 785408
    %v70 = vsel %vm69, %v66, %v68
    %v72 = vadd.f32 %v64, %v70
    %v73 = vmul.f32 %v72, 0.2
    %74 = vst [vmem:[#allocation5] sm:$0x3] %v73
    // Predicated region
    $region10: #{tpu_custom_call.1} parent=1 // pred_check
      _
    $region11: #{tpu_custom_call.1} parent=1 // pred_check_branch
      %76 = sbr.rel (0) target = $region13
    $region12: #{tpu_custom_call.1} parent=1 // pred_region
      %s78 = ssub.s32 32, 32
      %79 = vsyncadd [#allocation4], %s78
      %s81 = sshll.u32 [#allocation5], 4
      %s82 = int_to_ptr.vmem [resolvable:$true] %s81
      %84 = dma.vmem_to_hbm [thread:$0]  %s82, 32, %s1, [#allocation4]
    $region13: #{tpu_custom_call.1} parent=1 // pred_fallthru
      _
    // Predicated region
    $region14: #{tpu_custom_call.1} parent=1 // pred_check
      _
    $region15: #{tpu_custom_call.1} parent=1 // pred_check_branch
      %86 = sbr.rel (0) target = $region17
    $region16: #{tpu_custom_call.1} parent=1 // pred_region
      %87 = dma.done [#allocation4], 32
    $region17: #{tpu_custom_call.1} parent=1 // pred_fallthru
      _
    %88 = vsyncpa [#allocation3], 1
    %89 = vsyncpa [#allocation4], 1

</llo_original>
